<compile_context>
chip_gen: v7x
topology: tpu7x:2x2x1
jax: 0.10.0
libtpu: 0.0.40
codegen_flags: <defaults>
</compile_context>

<pallas_src>
import jax
import jax.numpy as jnp
from jax.experimental import pallas as pl
from jax.experimental.pallas import tpu as pltpu


def _patch_embed_kernel(p_ref, w_ref, b_ref, o_ref):
    # p_ref: (TN, K)  im2col'd patch rows for this token tile
    # w_ref: (K, E)   conv weight as (in, out) GEMM matrix (resident)
    # b_ref: (1, E)   conv bias, f32 (resident)
    # o_ref: (TN, E)  output tokens (lane-dense E-wide store)
    acc = jnp.dot(p_ref[...], w_ref[...], preferred_element_type=jnp.float32)
    acc = acc + b_ref[...]                      # f32 bias add, broadcast (1, E)
    o_ref[...] = acc.astype(o_ref.dtype)


def _round_up(x, m):
    return ((x + m - 1) // m) * m


def _cdiv(a, b):
    return (a + b - 1) // b


def _pick_token_tile(m, target=256):
    """Token-row tile: a multiple of 8 (sublane) or the full extent.

    Caps per-step VMEM, keeps the pipeline double-buffered for awkward token
    counts (e.g. 1369 for patch-14), and guarantees >=2 grid programs whenever
    possible so both v7x TensorCores get work.
    """
    if m < 16:
        return m                                    # tiny: one full-extent block
    tn = min(target, m)
    if tn == m or tn % 8 != 0:
        tn = _round_up((m + 1) // 2, 8)             # split into >=2 programs
        if tn >= m:
            tn = m
    return tn


def patch_embed_forward(x, w_conv, b_conv, patch_size, *, compute_dtype=None,
                        token_tile=256):
    """PatchEmbed forward.

    x:      (B, C_in, H_img, W_img)
    w_conv: (E, C_in, P, P)   PyTorch Conv2d weight layout
    b_conv: (E,)              Conv2d bias
    compute_dtype: operand dtype fed to the MXU (e.g. jnp.bfloat16 for a bf16
                   model); accumulation is always f32.  Default: x.dtype.
    Returns (tokens (B, Hp*Wp, E), Hp, Wp).  norm_layer=None -> Identity.
    """
    B, C, Him, Wim = x.shape
    P = int(patch_size)
    Hp, Wp = Him // P, Wim // P
    N = Hp * Wp
    E = w_conv.shape[0]
    K = C * P * P
    M = B * N

    cdt = jnp.dtype(compute_dtype) if compute_dtype is not None else x.dtype

    # im2col: pure layout plumbing in the wrapper.  Flatten order (c, kh, kw)
    # matches Conv2d's contraction.  allow_input_fusion below lets XLA fuse
    # this transpose (and the optional bf16 cast) into the pallas_call operand
    # instead of materializing a separate HBM slab.
    patches = (x.reshape(B, C, Hp, P, Wp, P)
                 .transpose(0, 2, 4, 1, 3, 5)        # (B, Hp, Wp, C, P, P)
                 .reshape(M, K)
                 .astype(cdt))
    w_t = jnp.asarray(w_conv).reshape(E, K).T.astype(cdt)      # (K, E)
    b2 = jnp.asarray(b_conv, jnp.float32).reshape(1, E)        # f32 bias

    TN = _pick_token_tile(M, target=token_tile)
    grid = (_cdiv(M, TN),)

    # Right-size scoped VMEM: double-buffered patch/output tiles + resident
    # (double-buffered) weight + bias + f32 accumulator, x2 + 8 MiB headroom.
    ib = jnp.dtype(cdt).itemsize
    vmem_need = (2 * TN * K * ib + 2 * TN * E * ib + 2 * K * E * ib
                 + 2 * E * 4 + TN * E * 4)
    vmem_limit = int(min(max(2 * vmem_need, 16 * 1024 * 1024) + (8 << 20),
                         100 * 1024 * 1024))

    out = pl.pallas_call(
        _patch_embed_kernel,
        out_shape=jax.ShapeDtypeStruct((M, E), cdt),
        grid_spec=pltpu.PrefetchScalarGridSpec(
            num_scalar_prefetch=0,
            grid=grid,
            in_specs=[
                pl.BlockSpec((TN, K), lambda i: (i, 0)),   # patch-row tile
                pl.BlockSpec((K, E), lambda i: (0, 0)),    # resident weight
                pl.BlockSpec((1, E), lambda i: (0, 0)),    # resident bias
            ],
            out_specs=pl.BlockSpec((TN, E), lambda i: (i, 0)),
        ),
        compiler_params=pltpu.CompilerParams(
            dimension_semantics=("parallel",),
            vmem_limit_bytes=vmem_limit,
            allow_input_fusion=[True, False, False],
        ),
    )(patches, w_t, b2)

    return out.reshape(B, N, E), Hp, Wp


def patch_embed_reference(x, w_conv, b_conv, patch_size):
    """Pure-JAX reference replicating the PyTorch forward (Conv2d path)."""
    y = jax.lax.conv_general_dilated(
        x, w_conv,
        window_strides=(patch_size, patch_size),
        padding="VALID",
        dimension_numbers=("NCHW", "OIHW", "NCHW"),
    )
    y = y + b_conv[None, :, None, None]
    B, E, Hp, Wp = y.shape
    y = y.reshape(B, E, Hp * Wp).transpose(0, 2, 1)   # flatten(2).transpose(1, 2)
    return y, Hp, Wp                                   # norm = Identity


if __name__ == "__main__":
    # Small shapes: B=2, in_chans=3, img=16x16, patch=4 -> 4x4=16 patches, embed=32.
    B, C_IN, IMG, PATCH, EMBED = 2, 3, 16, 4, 32

    key = jax.random.PRNGKey(0)
    kx, kw, kb = jax.random.split(key, 3)
    x = jax.random.normal(kx, (B, C_IN, IMG, IMG), dtype=jnp.float32)
    w_conv = jax.random.normal(kw, (EMBED, C_IN, PATCH, PATCH), dtype=jnp.float32) * 0.05
    b_conv = jax.random.normal(kb, (EMBED,), dtype=jnp.float32) * 0.05

    # f32 path (matches the PyTorch module's default numerics).
    out, Hp, Wp = patch_embed_forward(x, w_conv, b_conv, PATCH)
    out = jax.block_until_ready(out)

    ref, Hr, Wr = patch_embed_reference(x, w_conv, b_conv, PATCH)
    assert (Hp, Wp) == (Hr, Wr) == (IMG // PATCH, IMG // PATCH)
    assert out.shape == (B, Hp * Wp, EMBED)
    assert jnp.allclose(out, ref, atol=1e-4, rtol=1e-4), "f32 mismatch vs reference"

    # bf16 MXU path (what a bf16 model would feed); accumulation stays f32.
    out_bf16, _, _ = patch_embed_forward(x, w_conv, b_conv, PATCH,
                                         compute_dtype=jnp.bfloat16)
    out_bf16 = jax.block_until_ready(out_bf16)
    assert out_bf16.dtype == jnp.bfloat16
    assert jnp.allclose(out_bf16.astype(jnp.float32), ref, atol=3e-2, rtol=3e-2), \
        "bf16 mismatch vs reference"

    print("KERNEL_OK")
</pallas_src>

<mosaic_0001>
module attributes {stable_mosaic.version = 11 : i64} {
  func.func @_patch_embed_kernel(%arg0: i32, %arg1: memref<16x48xf32, #tpu.memory_space<vmem>>, %arg2: memref<48x32xf32, #tpu.memory_space<vmem>>, %arg3: memref<1x32xf32, #tpu.memory_space<vmem>>, %arg4: memref<16x32xf32, #tpu.memory_space<vmem>>) attributes {dimension_semantics = [#tpu.dimension_semantics<parallel>], iteration_bounds = array<i64: 2>, scalar_prefetch = 0 : i64, scratch_operands = 0 : i64, tpu.core_type = #tpu.core_type<tc>, window_params = [{transform_indices = @transform_0, window_bounds = array<i64: 16, 48>}, {pipeline_mode = #tpu.pipeline_mode<synchronous>, transform_indices = @transform_1, window_bounds = array<i64: 48, 32>}, {pipeline_mode = #tpu.pipeline_mode<synchronous>, transform_indices = @transform_2, window_bounds = array<i64: 1, 32>}, {transform_indices = @transform_3, window_bounds = array<i64: 16, 32>}]} {
    %c0 = arith.constant 0 : index
    %c0_0 = arith.constant 0 : index
    %0 = vector.load %arg1[%c0, %c0_0] : memref<16x48xf32, #tpu.memory_space<vmem>>, vector<16x48xf32>
    %c0_1 = arith.constant 0 : index
    %c0_2 = arith.constant 0 : index
    %1 = vector.load %arg2[%c0_1, %c0_2] : memref<48x32xf32, #tpu.memory_space<vmem>>, vector<48x32xf32>
    %cst = arith.constant dense<0.000000e+00> : vector<16x32xf32>
    %2 = tpu.matmul %0, %1, %cst {dimension_numbers = #tpu.dot_dimension_numbers<[1], [0], [0], [1], [0, 0, 1, 1], [], []>} : vector<16x48xf32>, vector<48x32xf32>, vector<16x32xf32> -> vector<16x32xf32>
    %c0_3 = arith.constant 0 : index
    %c0_4 = arith.constant 0 : index
    %3 = vector.load %arg3[%c0_3, %c0_4] : memref<1x32xf32, #tpu.memory_space<vmem>>, vector<1x32xf32>
    %4 = vector.broadcast %3 : vector<1x32xf32> to vector<16x32xf32>
    %5 = arith.addf %2, %4 : vector<16x32xf32>
    %c0_5 = arith.constant 0 : index
    %c0_6 = arith.constant 0 : index
    %6 = vector.load %arg4[%c0_5, %c0_6] : memref<16x32xf32, #tpu.memory_space<vmem>>, vector<16x32xf32>
    tpu.vector_store %arg4[%c0_5, %c0_6], %5 {strides = array<i32>} : memref<16x32xf32, #tpu.memory_space<vmem>>, vector<16x32xf32>,
    return
  }
  func.func @transform_0(%arg0: i32) -> (i32, i32) {
    %c0_i32 = arith.constant 0 : i32
    %c0_i32_0 = arith.constant 0 : i32
    return %arg0, %c0_i32 : i32, i32
  }
  func.func @transform_1(%arg0: i32) -> (i32, i32) {
    %c0_i32 = arith.constant 0 : i32
    %c0_i32_0 = arith.constant 0 : i32
    %c0_i32_1 = arith.constant 0 : i32
    return %c0_i32, %c0_i32_0 : i32, i32
  }
  func.func @transform_2(%arg0: i32) -> (i32, i32) {
    %c0_i32 = arith.constant 0 : i32
    %c0_i32_0 = arith.constant 0 : i32
    %c0_i32_1 = arith.constant 0 : i32
    return %c0_i32, %c0_i32_0 : i32, i32
  }
  func.func @transform_3(%arg0: i32) -> (i32, i32) {
    %c0_i32 = arith.constant 0 : i32
    %c0_i32_0 = arith.constant 0 : i32
    return %arg0, %c0_i32 : i32, i32
  }
}

</mosaic_0001>

<llo_original>
// kernel: tpu_custom_call.1
$region0: #{tpu_custom_call.1}
  #allocation0 [shape = 'u32[]', space=smem, size = 0x4, offset = 0x4, fixed_abs, tag = 'smem constant byte address 0x4 - core index']
  #allocation1 [shape = 'u32[144,128]{1,0:T(1,128)}', space=vmem, size = 0x12000, scoped, tag = 'internal scratch']
  %s0 = inlined_call_operand.vmem [shape: f32[32,48], index: 0, kind: input, shape index: {}]
  %s1 = inlined_call_operand.vmem [shape: f32[48,32], index: 1, kind: input, shape index: {}]
  %s2 = inlined_call_operand.vmem [shape: f32[1,32], index: 2, kind: input, shape index: {}]
  %s3 = inlined_call_operand.hbm [shape: f32[32,32], index: 3, kind: output, shape index: {}]
  %s4 = sld [smem:[#allocation0]]
  $region45: #{tpu_custom_call.1} parent=0
    _
  %s6 = ssub.s32 1, %s4
  %s7 = scalar_select 0, %s6, %s4
  $region1: #{tpu_custom_call.1} parent=0
    #allocation2 [shape = 'u8[16384]{0}', space=vmem, size = 0x4000, scoped, tag = 'output window, operand 0']
    #allocation3 [shape = 's32[2]{0}', space=sflag, size = 0x8, scoped, tag = 'scoped memory for tpu_custom_call.1']
    %8 = vsyncpa [#allocation3], 0
    %s9 = scalar_lea.sflag [#allocation3], 1
    %10 = vsyncpa %s9, 0
    loop: start=0, step=1, limit=4
    $region2: #{tpu_custom_call.1} parent=1 // loop_pre_header
      _
    $region3: #{tpu_custom_call.1} parent=1 // loop_header
      %s12 = sphi 0, %s16
      %p13 = scmp.ge.s32.totalorder %s12, 4
      %s22 = sphi 0, %s24
      %s25 = sphi 0, %s22
      %s26 = sphi 0, %s25
      %s42 = sphi 0, %s26
      %s46 = sphi 0, %s46
      %s48 = sphi 0, %s46
      %s49 = sphi 0, %s48
      %s63 = sphi 0, %s49
      %s67 = sphi 0, %s67
      %s69 = sphi 0, %s67
      %s70 = sphi 0, %s69
      %s84 = sphi 0, %s70
      %s90 = sphi 0, %s92
      %s93 = sphi 0, %s90
      %s94 = sphi 0, %s93
      %s110 = sphi 0, %s94
    $region4: #{tpu_custom_call.1} parent=1 // loop_header_branch
      %15 = sbr.rel (%p13) target = $region8
    $region5: #{tpu_custom_call.1} parent=1 // loop_body
      %s17 = ssub.s32 %s12, 1
      %s18 = ssub.s32 %s12, 2
      %s19 = sadd.s32 %s12, 1
      %s20 = ssub.s32 %s12, %s19
      %p21 = scmp.eq.s32.totalorder %s20, 0
      %s23 = sadd.s32 %s22, 1
      %s24 = scalar_select %p21, %s22, %s23
      %p27 = pneg %p21
      %p28 = scmp.eq.s32.totalorder %s12, 1
      %p29 = por %p27, %p28
      %p30 = scmp.ne.s32.totalorder %s22, %s25
      %p31 = scmp.eq.s32.totalorder %s12, 0
      %p32 = por %p30, %p31
      %p33 = scmp.ne.s32.totalorder %s22, %s25
      %p34 = scmp.eq.s32.totalorder %s17, 1
      %p35 = por %p33, %p34
      %p36 = scmp.ne.s32.totalorder %s25, %s26
      %p37 = scmp.eq.s32.totalorder %s17, 0
      %p38 = por %p36, %p37
      %p39 = scmp.ne.s32.totalorder %s25, %s26
      %p40 = scmp.eq.s32.totalorder %s18, 1
      %p41 = por %p39, %p40
      %p43 = scmp.ne.s32.totalorder %s26, %s42
      %p44 = scmp.eq.s32.totalorder %s18, 0
      %p45 = por %p43, %p44
      %s47 = sadd.s32 %s46, 1
      %p50 = scmp.eq.s32.totalorder %s12, 1
      %p51 = scmp.ne.s32.totalorder %s46, %s48
      %p52 = scmp.eq.s32.totalorder %s12, 0
      %p53 = por %p51, %p52
      %p54 = scmp.ne.s32.totalorder %s46, %s48
      %p55 = scmp.eq.s32.totalorder %s17, 1
      %p56 = por %p54, %p55
      %p57 = scmp.ne.s32.totalorder %s48, %s49
      %p58 = scmp.eq.s32.totalorder %s17, 0
      %p59 = por %p57, %p58
      %p60 = scmp.ne.s32.totalorder %s48, %s49
      %p61 = scmp.eq.s32.totalorder %s18, 1
      %p62 = por %p60, %p61
      %p64 = scmp.ne.s32.totalorder %s49, %s63
      %p65 = scmp.eq.s32.totalorder %s18, 0
      %p66 = por %p64, %p65
      %s68 = sadd.s32 %s67, 1
      %p71 = scmp.eq.s32.totalorder %s12, 1
      %p72 = scmp.ne.s32.totalorder %s67, %s69
      %p73 = scmp.eq.s32.totalorder %s12, 0
      %p74 = por %p72, %p73
      %p75 = scmp.ne.s32.totalorder %s67, %s69
      %p76 = scmp.eq.s32.totalorder %s17, 1
      %p77 = por %p75, %p76
      %p78 = scmp.ne.s32.totalorder %s69, %s70
      %p79 = scmp.eq.s32.totalorder %s17, 0
      %p80 = por %p78, %p79
      %p81 = scmp.ne.s32.totalorder %s69, %s70
      %p82 = scmp.eq.s32.totalorder %s18, 1
      %p83 = por %p81, %p82
      %p85 = scmp.ne.s32.totalorder %s70, %s84
      %p86 = scmp.eq.s32.totalorder %s18, 0
      %p87 = por %p85, %p86
      %s88 = ssub.s32 %s12, %s19
      %p89 = scmp.eq.s32.totalorder %s88, 0
      %s91 = sadd.s32 %s90, 1
      %s92 = scalar_select %p89, %s90, %s91
      %p95 = pneg %p89
      %p96 = scmp.eq.s32.totalorder %s12, 1
      %p97 = por %p95, %p96
      %p98 = scmp.ne.s32.totalorder %s90, %s93
      %p99 = scmp.eq.s32.totalorder %s12, 0
      %p100 = por %p98, %p99
      %p101 = scmp.ne.s32.totalorder %s90, %s93
      %p102 = scmp.eq.s32.totalorder %s17, 1
      %p103 = por %p101, %p102
      %p104 = scmp.ne.s32.totalorder %s93, %s94
      %p105 = scmp.eq.s32.totalorder %s17, 0
      %p106 = por %p104, %p105
      %p107 = scmp.ne.s32.totalorder %s93, %s94
      %p108 = scmp.eq.s32.totalorder %s18, 1
      %p109 = por %p107, %p108
      %p111 = scmp.ne.s32.totalorder %s94, %s110
      %p112 = scmp.eq.s32.totalorder %s18, 0
      %p113 = por %p111, %p112
      %p114 = scmp.le.s32.totalorder 1, %s12
      %p115 = scmp.lt.s32.totalorder %s12, 3
      %p116 = pnand %p114, %p115
      %p117 = pneg %p116
      // Predicated region
      $region9: #{tpu_custom_call.1} parent=5 // pred_check
        _
      $region10: #{tpu_custom_call.1} parent=5 // pred_check_branch
        %119 = sbr.rel (%p116) target = $region12
      $region11: #{tpu_custom_call.1} parent=5 // pred_region
        %s120 = ssub.s32 %s12, 1
        // Predicated region
        $region13: #{tpu_custom_call.1} parent=11 // pred_check
          %p121 = pneg %p59
        $region14: #{tpu_custom_call.1} parent=11 // pred_check_branch
          %123 = sbr.rel (%p121) target = $region16
        $region15: #{tpu_custom_call.1} parent=11 // pred_region
          _
        $region16: #{tpu_custom_call.1} parent=11 // pred_fallthru
          _
        // Predicated region
        $region17: #{tpu_custom_call.1} parent=11 // pred_check
          %p124 = pneg %p80
        $region18: #{tpu_custom_call.1} parent=11 // pred_check_branch
          %126 = sbr.rel (%p124) target = $region20
        $region19: #{tpu_custom_call.1} parent=11 // pred_region
          _
        $region20: #{tpu_custom_call.1} parent=11 // pred_fallthru
          _
      $region12: #{tpu_custom_call.1} parent=5 // pred_fallthru
        _
      %p127 = scmp.lt.s32.totalorder %s12, 2
      // Predicated region
      $region21: #{tpu_custom_call.1} parent=5 // pred_check
        %p128 = pneg %p127
      $region22: #{tpu_custom_call.1} parent=5 // pred_check_branch
        %130 = sbr.rel (%p128) target = $region24
      $region23: #{tpu_custom_call.1} parent=5 // pred_region
        // Predicated region
        $region25: #{tpu_custom_call.1} parent=23 // pred_check
          %p131 = pneg %p32
        $region26: #{tpu_custom_call.1} parent=23 // pred_check_branch
          %133 = sbr.rel (%p131) target = $region28
        $region27: #{tpu_custom_call.1} parent=23 // pred_region
          %s134 = smul.u32 2, %s12
          %p135 = scmp.lt.s32.totalorder %s134, 3
          %s136 = scalar_select %p135, %s134, 3
          %s137 = smul.addr %s136, 8
          %s138 = scalar_lea.vmem %s0, %s137
          %s139 = smul.u32 2, %s12
        $region28: #{tpu_custom_call.1} parent=23 // pred_fallthru
          _
      $region24: #{tpu_custom_call.1} parent=5 // pred_fallthru
        _
      %p140 = scmp.le.s32.totalorder 1, %s12
      %p141 = scmp.lt.s32.totalorder %s12, 3
      %p142 = pnand %p140, %p141
      %p143 = pneg %p142
      // Predicated region
      $region29: #{tpu_custom_call.1} parent=5 // pred_check
        _
      $region30: #{tpu_custom_call.1} parent=5 // pred_check_branch
        %145 = sbr.rel (%p142) target = $region32
      $region31: #{tpu_custom_call.1} parent=5 // pred_region
        %s146 = ssub.s32 %s12, 1
        %s147 = smul.u32 2, %s17
        %p148 = scmp.lt.s32.totalorder %s147, 3
        %s149 = scalar_select %p148, %s147, 3
        %s150 = smul.addr %s149, 8
        %s151 = scalar_lea.vmem %s0, %s150
        %p152 = pneg %p38
        %p153 = pneg %p35
        %p154 = pneg %p59
        %p155 = pneg %p56
        %p156 = pneg %p80
        %p157 = pneg %p77
        %p158 = pneg %p106
        %p159 = pneg %p103
        %s160 = sand.u32 %s93, 1
        %s161 = scalar_lea.sflag [#allocation3], %s160
        %s162 = sand.u32 %s93, 1
        %s163 = smul.addr %s162, 16
        %s164 = scalar_lea.vmem [#allocation2], %s163
        %s165 = smul.u32 2, %s17
        %p166 = scmp.lt.s32.totalorder %s165, 3
        %s167 = scalar_select %p166, %s165, 3
        %s168 = smul.addr %s167, 8
        %s169 = scalar_lea.vmem %s0, %s168
        %s170 = smul.u32 2, %s17
        %s171 = smul.u32 2, %s17
        %v172 = vld [vmem:[%s169] sm:$0xff]
        %v173 = vld [vmem:[%s169 + $0x8] sm:$0xff]
        %v174 = vld [vmem:[%s1] sm:$0xff]
        %v175 = vld [vmem:[%s1 + $0x8] sm:$0xff]
        %v176 = vld [vmem:[%s1 + $0x10] sm:$0xff]
        %v177 = vld [vmem:[%s1 + $0x18] sm:$0xff]
        %v178 = vld [vmem:[%s1 + $0x20] sm:$0xff]
        %v179 = vld [vmem:[%s1 + $0x28] sm:$0xff]
        %v180 = vld [vmem:[%s2] sm:$0x1]
        %v182 = vlaneseq
        %v183 = vshrl.u32 %v182, 7
        %v184 = vsub.s32 0, %v183
        %v185 = vrot.slane %v180, %v184
        %vm187 = vcmask 392192
        %v189 = vsel %vm187, %v172, 0
        %v192 = vsel %vm187, %v173, 0
        %194 = vmatprep.subr.mxu0 0.0
        %195 = vmatpush1.msra.mxu0 %v174
        %196 = vmatprep.subr.mxu0 0.0
        %197 = vmatpush1.msra.mxu0 %v175
        %198 = vmatprep.subr.mxu0 0.0
        %199 = vmatpush1.msra.mxu0 %v176
        %200 = vmatprep.subr.mxu0 0.0
        %201 = vmatpush1.msra.mxu0 %v177
        %202 = vmatprep.subr.mxu0 0.0
        %203 = vmatpush1.msra.mxu0 %v178
        %204 = vmatprep.subr.mxu0 0.0
        %205 = vmatpush1.msra.mxu0 %v179
        %206 = vmatprep.subr.mxu0 0.0
        %207 = vmatpush1.msra.mxu0 0.0
        %208 = vmatprep.subr.mxu0 0.0
        %209 = vmatpush1.msra.mxu0 0.0
        %210 = vmatprep.subr.mxu0 0.0
        %211 = vmatpush1.msra.mxu0 0.0
        %212 = vmatprep.subr.mxu0 0.0
        %213 = vmatpush1.msra.mxu0 0.0
        %214 = vmatprep.subr.mxu0 0.0
        %215 = vmatpush1.msra.mxu0 0.0
        %216 = vmatprep.subr.mxu0 0.0
        %217 = vmatpush1.msra.mxu0 0.0
        %218 = vmatprep.subr.mxu0 0.0
        %219 = vmatpush1.msra.mxu0 0.0
        %220 = vmatprep.subr.mxu0 0.0
        %221 = vmatpush1.msra.mxu0 0.0
        %222 = vmatprep.subr.mxu0 0.0
        %223 = vmatpush1.msra.mxu0 0.0
        %224 = vmatprep.subr.mxu0 0.0
        %225 = vmatpush1.msra.mxu0 0.0
        %226 = vmatprep.subr.mxu0 0.0
        %227 = vmatpush1.msra.mxu0 0.0
        %228 = vmatprep.subr.mxu0 0.0
        %229 = vmatpush1.msra.mxu0 0.0
        %230 = vmatprep.subr.mxu0 0.0
        %231 = vmatpush1.msra.mxu0 0.0
        %232 = vmatprep.subr.mxu0 0.0
        %233 = vmatpush1.msra.mxu0 0.0
        %234 = vmatprep.subr.mxu0 0.0
        %235 = vmatpush1.msra.mxu0 0.0
        %236 = vmatprep.subr.mxu0 0.0
        %237 = vmatpush1.msra.mxu0 0.0
        %238 = vmatprep.subr.mxu0 0.0
        %239 = vmatpush1.msra.mxu0 0.0
        %240 = vmatprep.subr.mxu0 0.0
        %241 = vmatpush1.msra.mxu0 0.0
        %242 = vmatprep.subr.mxu0 0.0
        %243 = vmatpush1.msra.mxu0 0.0
        %244 = vmatprep.subr.mxu0 0.0
        %245 = vmatpush1.msra.mxu0 0.0
        %246 = vmatprep.subr.mxu0 0.0
        %247 = vmatpush1.msra.mxu0 0.0
        %248 = vmatprep.subr.mxu0 0.0
        %249 = vmatpush1.msra.mxu0 0.0
        %250 = vmatprep.subr.mxu0 0.0
        %251 = vmatpush1.msra.mxu0 0.0
        %252 = vmatprep.subr.mxu0 0.0
        %253 = vmatpush1.msra.mxu0 0.0
        %254 = vmatprep.subr.mxu0 0.0
        %255 = vmatpush1.msra.mxu0 0.0
        %256 = vmatprep.subr.mxu0 0.0
        %257 = vmatpush1.msra.mxu0 0.0
        %258 = vmatprep.mubr.f32.mxu0 0.0
        %259 = vmatmul.mubr.f32.gmra.mrb[0].mxu0 %v189
        %v260 = vpop.f32.mrb[0].mxu0
        %v261 = vadd.f32 %v185, %v260
        %v262 = vpop.f32.mrb[0].mxu0
        %263 = vmatprep.mubr.f32.mxu0 0.0
        %264 = vmatmul.mubr.f32.gmra.mrb[0].mxu0 %v192
        %v265 = vpop.f32.mrb[0].mxu0
        %v266 = vadd.f32 %v185, %v265
        %v267 = vpop.f32.mrb[0].mxu0
        %268 = vdwg.mxu0
        %vm269 = vcmask 261120
        %270 = vst.msk [vmem:[%s164] sm:$0xff] %vm269, %v261
        %271 = vst.msk [vmem:[%s164 + $0x8] sm:$0xff] %vm269, %v266
        %s272 = sand.u32 %s93, 1
        %s273 = scalar_lea.sflag [#allocation3], %s272
        %s274 = sand.u32 %s93, 1
        %s275 = smul.addr %s274, 16
        %s276 = scalar_lea.vmem [#allocation2], %s275
        // Predicated region
        $region33: #{tpu_custom_call.1} parent=31 // pred_check
          %p277 = pneg %p103
        $region34: #{tpu_custom_call.1} parent=31 // pred_check_branch
          %279 = sbr.rel (%p277) target = $region36
        $region35: #{tpu_custom_call.1} parent=31 // pred_region
          %s280 = smul.u32 2, %s17
          %s282 = ssub.s32 256, 256
          %283 = vsyncadd %s273, %s282
          %s284 = smul.addr %s280, 128
          %s285 = scalar_lea.hbm %s3, %s284
          %s286 = sshll.u32 %s276, 4
          %s287 = int_to_ptr.vmem [resolvable:$true] %s286
          %292 = dma.vmem_to_hbm [thread:$0]  %s287, 256, %s285, %s273, 128, 128, 8
        $region36: #{tpu_custom_call.1} parent=31 // pred_fallthru
          _
      $region32: #{tpu_custom_call.1} parent=5 // pred_fallthru
        _
      %p293 = scmp.le.s32.totalorder 2, %s12
      // Predicated region
      $region37: #{tpu_custom_call.1} parent=5 // pred_check
        %p294 = pneg %p293
      $region38: #{tpu_custom_call.1} parent=5 // pred_check_branch
        %296 = sbr.rel (%p294) target = $region40
      $region39: #{tpu_custom_call.1} parent=5 // pred_region
        %s297 = ssub.s32 %s12, 2
        // Predicated region
        $region41: #{tpu_custom_call.1} parent=39 // pred_check
          %p298 = pneg %p109
        $region42: #{tpu_custom_call.1} parent=39 // pred_check_branch
          %300 = sbr.rel (%p298) target = $region44
        $region43: #{tpu_custom_call.1} parent=39 // pred_region
          %s301 = sand.u32 %s94, 1
          %s302 = scalar_lea.sflag [#allocation3], %s301
          %s303 = sand.u32 %s94, 1
          %s304 = smul.addr %s303, 16
          %s305 = scalar_lea.vmem [#allocation2], %s304
          %306 = dma.done %s302, 256
        $region44: #{tpu_custom_call.1} parent=39 // pred_fallthru
          _
      $region40: #{tpu_custom_call.1} parent=5 // pred_fallthru
        _
    $region6: #{tpu_custom_call.1} parent=1 // loop_footer
      %s16 = sadd.s32 1, %s12
    $region7: #{tpu_custom_call.1} parent=1 // loop_footer_branch
      %11 = sbr.rel target = $region3
    $region8: #{tpu_custom_call.1} parent=1 // loop_exit
      _
    %307 = vsyncpa [#allocation3], 1
    %s308 = scalar_lea.sflag [#allocation3], 1
    %309 = vsyncpa %s308, 1

</llo_original>
